<compile_context>
chip_gen: v7x
topology: tpu7x:2x2x1
jax: 0.10.0
libtpu: 0.0.40
codegen_flags: <defaults>
</compile_context>

<pallas_src>
from collections import namedtuple

import jax
import jax.numpy as jnp
from jax.experimental import pallas as pl
from jax.experimental.pallas import tpu as pltpu


def _round_up(v: int, m: int) -> int:
    return ((v + m - 1) // m) * m


def _vmem_budget_bytes() -> int:
    """~75% of physical VMEM: 48 MiB on v7x (64 MiB/TC), 96 MiB on v5e/v6e."""
    phys = 64 * 1024 * 1024  # conservative fallback = v7x per-TC VMEM
    try:
        info = pltpu.get_tpu_info()
        phys = int(getattr(info, "vmem_capacity_bytes", phys) or phys)
    except Exception:
        pass
    return (phys * 3) // 4


Plan = namedtuple("Plan", "tm tn tk Bp INp OUTp vmem_limit")


def plan_linear(B: int, IN: int, OUT: int) -> Plan:
    """Derive tile sizes / padded dims / VMEM limit for this chip generation."""
    budget = _vmem_budget_bytes()

    tm = min(256, _round_up(B, 8))
    out128 = _round_up(OUT, 128)
    tn = min(512, out128)
    in128 = _round_up(IN, 128)

    def footprint(tm_, tn_, tk_):
        # 2x double-buffered x / W / bias tiles + out tile + f32 acc headroom.
        return (2 * tm_ * tk_ + 2 * tk_ * tn_ + 2 * tn_ + 3 * tm_ * tn_) * 4

    # Prefer whole-K (single reduction step); otherwise the largest tk fitting.
    tk = 128
    for cand in (in128, 2048, 1024, 512, 256, 128):
        if cand > in128:
            continue
        if footprint(tm, tn, cand) <= budget:
            tk = cand
            break

    Bp = _round_up(B, tm)
    OUTp = _round_up(OUT, tn)
    INp = _round_up(IN, tk)

    # v7x has 2 TensorCores; "parallel" grid axes are sharded across them.
    # Guarantee >=2 parallel steps when the layout minimums allow it.
    if (Bp // tm) * (OUTp // tn) == 1:
        if tn >= 256:
            tn //= 2
        elif tm >= 16:
            tm //= 2

    vmem_limit = min(budget, max(32 * 1024 * 1024, 2 * footprint(tm, tn, tk)))
    return Plan(tm, tn, tk, Bp, INp, OUTp, vmem_limit)


def prepare_linear_params(weight, bias, plan: Plan):
    """One-time (cacheable) parameter prep: W -> (IN, OUT), zero-padded to tile
    multiples; bias -> (1, OUTp).  Hoist this out of the per-call hot path."""
    OUT, IN = weight.shape
    w_t = weight.T  # (IN, OUT): canonical A@B layout, output dim on lanes.
    if (IN, OUT) != (plan.INp, plan.OUTp):
        w_t = jnp.pad(w_t, ((0, plan.INp - IN), (0, plan.OUTp - OUT)))
    b = bias
    if OUT != plan.OUTp:
        b = jnp.pad(b, (0, plan.OUTp - OUT))
    return w_t, b.reshape(1, plan.OUTp)


def _linear_kernel_f32(x_ref, w_ref, b_ref, o_ref):
    # x: (tm, tk)  w: (tk, tn)  b: (1, tn)  o: (tm, tn) f32.
    # o_ref's index map ignores k, so it stays VMEM-resident across the k axis
    # and doubles as the accumulator (no scratch, no epilogue copy).
    k = pl.program_id(2)

    @pl.when(k == 0)
    def _():
        # Fold the bias into the init (no separate epilogue add).
        o_ref[...] = jnp.broadcast_to(b_ref[...], o_ref.shape)

    o_ref[...] += jnp.dot(x_ref[...], w_ref[...],
                          preferred_element_type=jnp.float32)


def _linear_kernel_lowp(x_ref, w_ref, b_ref, o_ref, acc_ref):
    # Low-precision output path: accumulate in an f32 scratch, cast at the end.
    k = pl.program_id(2)

    @pl.when(k == 0)
    def _():
        acc_ref[...] = jnp.broadcast_to(b_ref[...], acc_ref.shape).astype(jnp.float32)

    acc_ref[...] += jnp.dot(x_ref[...], w_ref[...],
                            preferred_element_type=jnp.float32)

    @pl.when(k == pl.num_programs(2) - 1)
    def _():
        o_ref[...] = acc_ref[...].astype(o_ref.dtype)


def linear_apply(x, w_t_padded, b_padded, plan: Plan, out_rows: int, out_cols: int):
    """Hot path: (optionally) pad x, run the tiled matmul, slice the result."""
    B, IN = x.shape
    if (B, IN) != (plan.Bp, plan.INp):
        x = jnp.pad(x, ((0, plan.Bp - B), (0, plan.INp - IN)))

    grid = (plan.Bp // plan.tm, plan.OUTp // plan.tn, plan.INp // plan.tk)

    f32_out = x.dtype == jnp.float32
    kernel = _linear_kernel_f32 if f32_out else _linear_kernel_lowp
    scratch = [] if f32_out else [pltpu.VMEM((plan.tm, plan.tn), jnp.float32)]

    out_p = pl.pallas_call(
        kernel,
        out_shape=jax.ShapeDtypeStruct((plan.Bp, plan.OUTp), x.dtype),
        grid=grid,
        in_specs=[
            pl.BlockSpec((plan.tm, plan.tk), lambda i, j, k: (i, k)),   # x tile
            pl.BlockSpec((plan.tk, plan.tn), lambda i, j, k: (k, j)),   # W.T tile
            pl.BlockSpec((1, plan.tn), lambda i, j, k: (0, j)),         # bias tile
        ],
        out_specs=pl.BlockSpec((plan.tm, plan.tn), lambda i, j, k: (i, j)),
        scratch_shapes=scratch,
        compiler_params=pltpu.CompilerParams(
            dimension_semantics=("parallel", "parallel", "arbitrary"),
            vmem_limit_bytes=plan.vmem_limit,
        ),
    )(x, w_t_padded, b_padded)

    return out_p[:out_rows, :out_cols]


def linear_regression_forward(x, weight, bias, drop_p: float = 0.0,
                              training: bool = False):
    """Pallas implementation of LinearRegression.forward: dropout(identity) + Linear.

    x:      (B, input_size)            float32
    weight: (output_size, input_size)  float32 (torch Linear convention)
    bias:   (output_size,)             float32
    """
    # Dropout with p=0.0 (module default) / eval mode is an identity.
    # TODO(synk): stochastic dropout (p>0, training) would need pltpu.prng_seed /
    # pltpu.prng_random_bits masking with 1/(1-p) scaling; not needed for p=0.
    assert drop_p == 0.0 or not training

    B, IN = x.shape
    OUT, IN2 = weight.shape
    assert IN == IN2 and bias.shape == (OUT,)

    plan = plan_linear(B, IN, OUT)
    # In a real deployment, prepare_linear_params() is called once and cached;
    # it is inlined here to keep the script self-contained.
    w_t, b_row = prepare_linear_params(weight, bias, plan)
    return linear_apply(x, w_t, b_row, plan, out_rows=B, out_cols=OUT)


if __name__ == "__main__":
    # Small shapes implied by the module: input_size=32, output_size=16, batch=8.
    input_size, output_size, batch = 32, 16, 8

    key = jax.random.PRNGKey(0)
    kx, kw, kb = jax.random.split(key, 3)

    x = jax.random.normal(kx, (batch, input_size), dtype=jnp.float32)
    bound = 1.0 / (input_size ** 0.5)
    weight = jax.random.uniform(kw, (output_size, input_size),
                                minval=-bound, maxval=bound, dtype=jnp.float32)
    bias = jax.random.uniform(kb, (output_size,),
                              minval=-bound, maxval=bound, dtype=jnp.float32)

    y = linear_regression_forward(x, weight, bias)
    y = jax.block_until_ready(y)

    # Sanity check against plain-JAX reference.
    y_ref = x @ weight.T + bias
    assert y.shape == (batch, output_size)
    assert jnp.allclose(y, y_ref, atol=1e-5, rtol=1e-5)

    print("KERNEL_OK")
</pallas_src>

<mosaic_0001>
module attributes {stable_mosaic.version = 11 : i64} {
  func.func @_linear_kernel_f32(%arg0: i32, %arg1: i32, %arg2: i32, %arg3: memref<8x128xf32, #tpu.memory_space<vmem>>, %arg4: memref<128x128xf32, #tpu.memory_space<vmem>>, %arg5: memref<1x128xf32, #tpu.memory_space<vmem>>, %arg6: memref<8x128xf32, #tpu.memory_space<vmem>>) attributes {dimension_semantics = [#tpu.dimension_semantics<parallel>, #tpu.dimension_semantics<parallel>, #tpu.dimension_semantics<arbitrary>], iteration_bounds = array<i64: 1, 1, 1>, scalar_prefetch = 0 : i64, scratch_operands = 0 : i64, tpu.core_type = #tpu.core_type<tc>, window_params = [{transform_indices = @transform_0, window_bounds = array<i64: 8, 128>}, {transform_indices = @transform_1, window_bounds = array<i64: 128, 128>}, {transform_indices = @transform_2, window_bounds = array<i64: 1, 128>}, {transform_indices = @transform_3, window_bounds = array<i64: 8, 128>}]} {
    %c0_i32 = arith.constant 0 : i32
    %0 = arith.cmpi eq, %arg2, %c0_i32 : i32
    %1 = arith.extui %0 : i1 to i32
    %c0_i32_0 = arith.constant 0 : i32
    %2 = arith.cmpi ne, %1, %c0_i32_0 : i32
    scf.if %2 {
      %c0_8 = arith.constant 0 : index
      %c0_9 = arith.constant 0 : index
      %9 = vector.load %arg5[%c0_8, %c0_9] : memref<1x128xf32, #tpu.memory_space<vmem>>, vector<1x128xf32>
      %10 = vector.shape_cast %9 : vector<1x128xf32> to vector<1x128xf32>
      %11 = vector.broadcast %10 : vector<1x128xf32> to vector<8x128xf32>
      %c0_10 = arith.constant 0 : index
      %c0_11 = arith.constant 0 : index
      %12 = vector.load %arg6[%c0_10, %c0_11] : memref<8x128xf32, #tpu.memory_space<vmem>>, vector<8x128xf32>
      tpu.vector_store %arg6[%c0_10, %c0_11], %11 {strides = array<i32>} : memref<8x128xf32, #tpu.memory_space<vmem>>, vector<8x128xf32>,
    } else {
    }
    %c0 = arith.constant 0 : index
    %c0_1 = arith.constant 0 : index
    %3 = vector.load %arg6[%c0, %c0_1] : memref<8x128xf32, #tpu.memory_space<vmem>>, vector<8x128xf32>
    %c0_2 = arith.constant 0 : index
    %c0_3 = arith.constant 0 : index
    %4 = vector.load %arg3[%c0_2, %c0_3] : memref<8x128xf32, #tpu.memory_space<vmem>>, vector<8x128xf32>
    %c0_4 = arith.constant 0 : index
    %c0_5 = arith.constant 0 : index
    %5 = vector.load %arg4[%c0_4, %c0_5] : memref<128x128xf32, #tpu.memory_space<vmem>>, vector<128x128xf32>
    %cst = arith.constant dense<0.000000e+00> : vector<8x128xf32>
    %6 = tpu.matmul %4, %5, %cst {dimension_numbers = #tpu.dot_dimension_numbers<[1], [0], [0], [1], [0, 0, 1, 1], [], []>} : vector<8x128xf32>, vector<128x128xf32>, vector<8x128xf32> -> vector<8x128xf32>
    %7 = arith.addf %3, %6 : vector<8x128xf32>
    %c0_6 = arith.constant 0 : index
    %c0_7 = arith.constant 0 : index
    %8 = vector.load %arg6[%c0_6, %c0_7] : memref<8x128xf32, #tpu.memory_space<vmem>>, vector<8x128xf32>
    tpu.vector_store %arg6[%c0_6, %c0_7], %7 {strides = array<i32>} : memref<8x128xf32, #tpu.memory_space<vmem>>, vector<8x128xf32>,
    return
  }
  func.func @transform_0(%arg0: i32, %arg1: i32, %arg2: i32) -> (i32, i32) {
    %c0_i32 = arith.constant 0 : i32
    return %arg0, %arg2 : i32, i32
  }
  func.func @transform_1(%arg0: i32, %arg1: i32, %arg2: i32) -> (i32, i32) {
    %c0_i32 = arith.constant 0 : i32
    return %arg2, %arg1 : i32, i32
  }
  func.func @transform_2(%arg0: i32, %arg1: i32, %arg2: i32) -> (i32, i32) {
    %c0_i32 = arith.constant 0 : i32
    %c0_i32_0 = arith.constant 0 : i32
    return %c0_i32, %arg1 : i32, i32
  }
  func.func @transform_3(%arg0: i32, %arg1: i32, %arg2: i32) -> (i32, i32) {
    %c0_i32 = arith.constant 0 : i32
    return %arg0, %arg1 : i32, i32
  }
}

</mosaic_0001>

<llo_original>
// kernel: tpu_custom_call.1
$region0: #{tpu_custom_call.1}
  #allocation0 [shape = 'u32[]', space=smem, size = 0x4, offset = 0x4, fixed_abs, tag = 'smem constant byte address 0x4 - core index']
  #allocation1 [shape = 'u32[144,128]{1,0:T(1,128)}', space=vmem, size = 0x12000, scoped, tag = 'internal scratch']
  %s0 = inlined_call_operand.hbm [shape: f32[8,128], index: 0, kind: input, shape index: {}]
  %s1 = inlined_call_operand.hbm [shape: f32[128,128], index: 1, kind: input, shape index: {}]
  %s2 = inlined_call_operand.vmem [shape: f32[1,128], index: 2, kind: input, shape index: {}]
  %s3 = inlined_call_operand.hbm [shape: f32[8,128], index: 3, kind: output, shape index: {}]
  %s4 = sld [smem:[#allocation0]]
  $region34: #{tpu_custom_call.1} parent=0
    _
  %s6 = ssub.s32 1, %s4
  %s7 = scalar_select 0, %s6, %s4
  $region1: #{tpu_custom_call.1} parent=0
    #allocation2 [shape = 'u8[4096]{0}', space=vmem, size = 0x1000, scoped, tag = 'input window, operand 0, single buffered']
    #allocation3 [shape = 's32[1]{0}', space=sflag, size = 0x4, scoped, tag = 'scoped memory for tpu_custom_call.1']
    #allocation4 [shape = 's32[1]{0}', space=sflag, size = 0x4, scoped, tag = 'scoped memory for tpu_custom_call.1']
    #allocation5 [shape = 'u8[65536]{0}', space=vmem, size = 0x10000, scoped, tag = 'input window, operand 1, single buffered']
    #allocation6 [shape = 's32[1]{0}', space=sflag, size = 0x4, scoped, tag = 'scoped memory for tpu_custom_call.1']
    #allocation7 [shape = 'u8[4096]{0}', space=vmem, size = 0x1000, scoped, tag = 'output window, operand 0, single buffered']
    %8 = vsyncpa [#allocation3], 0
    %9 = vsyncpa [#allocation6], 0
    %10 = vsyncpa [#allocation4], 0
    // Predicated region
    $region2: #{tpu_custom_call.1} parent=1 // pred_check
      _
    $region3: #{tpu_custom_call.1} parent=1 // pred_check_branch
      %12 = sbr.rel (0) target = $region5
    $region4: #{tpu_custom_call.1} parent=1 // pred_region
      %s14 = ssub.s32 128, 128
      %15 = vsyncadd [#allocation3], %s14
      %s17 = sshll.u32 [#allocation2], 4
      %s18 = int_to_ptr.vmem [resolvable:$true] %s17
      %20 = dma.hbm_to_vmem [thread:$0]  %s0, 128, %s18, [#allocation3]
    $region5: #{tpu_custom_call.1} parent=1 // pred_fallthru
      _
    // Predicated region
    $region6: #{tpu_custom_call.1} parent=1 // pred_check
      _
    $region7: #{tpu_custom_call.1} parent=1 // pred_check_branch
      %22 = sbr.rel (0) target = $region9
    $region8: #{tpu_custom_call.1} parent=1 // pred_region
      %s24 = ssub.s32 2048, 2048
      %25 = vsyncadd [#allocation6], %s24
      %s26 = sshll.u32 [#allocation5], 4
      %s27 = int_to_ptr.vmem [resolvable:$true] %s26
      %32 = dma.hbm_to_vmem [thread:$0]  %s1, 2048, %s27, [#allocation6], 128, 128, 8
    $region9: #{tpu_custom_call.1} parent=1 // pred_fallthru
      _
    // Predicated region
    $region10: #{tpu_custom_call.1} parent=1 // pred_check
      _
    $region11: #{tpu_custom_call.1} parent=1 // pred_check_branch
      %34 = sbr.rel (0) target = $region13
    $region12: #{tpu_custom_call.1} parent=1 // pred_region
      _
    $region13: #{tpu_custom_call.1} parent=1 // pred_fallthru
      _
    // Predicated region
    $region14: #{tpu_custom_call.1} parent=1 // pred_check
      _
    $region15: #{tpu_custom_call.1} parent=1 // pred_check_branch
      %36 = sbr.rel (0) target = $region17
    $region16: #{tpu_custom_call.1} parent=1 // pred_region
      %37 = dma.done [#allocation3], 128
    $region17: #{tpu_custom_call.1} parent=1 // pred_fallthru
      _
    // Predicated region
    $region18: #{tpu_custom_call.1} parent=1 // pred_check
      _
    $region19: #{tpu_custom_call.1} parent=1 // pred_check_branch
      %39 = sbr.rel (0) target = $region21
    $region20: #{tpu_custom_call.1} parent=1 // pred_region
      %40 = dma.done [#allocation6], 2048
    $region21: #{tpu_custom_call.1} parent=1 // pred_fallthru
      _
    %p41 = scmp.eq.s32.totalorder 0, 0
    // Predicated region
    $region22: #{tpu_custom_call.1} parent=1 // pred_check
      %p42 = pneg %p41
    $region23: #{tpu_custom_call.1} parent=1 // pred_check_branch
      %44 = sbr.rel (%p42) target = $region25
    $region24: #{tpu_custom_call.1} parent=1 // pred_region
      %v45 = vld [vmem:[%s2] sm:$0x1]
      %v47 = vlaneseq
      %v48 = vshrl.u32 %v47, 7
      %v49 = vsub.s32 0, %v48
      %v50 = vrot.slane %v45, %v49
      %52 = vst [vmem:[#allocation7] sm:$0xff] %v50
    $region25: #{tpu_custom_call.1} parent=1 // pred_fallthru
      _
    %v53 = vld [vmem:[#allocation7] sm:$0xff]
    %v54 = vld [vmem:[#allocation2] sm:$0xff]
    %v55 = vld [vmem:[#allocation5] sm:$0xff]
    %v56 = vld [vmem:[#allocation5 + $0x8] sm:$0xff]
    %v57 = vld [vmem:[#allocation5 + $0x10] sm:$0xff]
    %v58 = vld [vmem:[#allocation5 + $0x18] sm:$0xff]
    %v59 = vld [vmem:[#allocation5 + $0x20] sm:$0xff]
    %v60 = vld [vmem:[#allocation5 + $0x28] sm:$0xff]
    %v61 = vld [vmem:[#allocation5 + $0x30] sm:$0xff]
    %v62 = vld [vmem:[#allocation5 + $0x38] sm:$0xff]
    %v63 = vld [vmem:[#allocation5 + $0x40] sm:$0xff]
    %v64 = vld [vmem:[#allocation5 + $0x48] sm:$0xff]
    %v65 = vld [vmem:[#allocation5 + $0x50] sm:$0xff]
    %v66 = vld [vmem:[#allocation5 + $0x58] sm:$0xff]
    %v67 = vld [vmem:[#allocation5 + $0x60] sm:$0xff]
    %v68 = vld [vmem:[#allocation5 + $0x68] sm:$0xff]
    %v69 = vld [vmem:[#allocation5 + $0x70] sm:$0xff]
    %v70 = vld [vmem:[#allocation5 + $0x78] sm:$0xff]
    %71 = vmatprep.subr.mxu0 0.0
    %72 = vmatpush1.msra.mxu0 %v55
    %73 = vmatprep.subr.mxu0 0.0
    %74 = vmatpush1.msra.mxu0 %v56
    %75 = vmatprep.subr.mxu0 0.0
    %76 = vmatpush1.msra.mxu0 %v57
    %77 = vmatprep.subr.mxu0 0.0
    %78 = vmatpush1.msra.mxu0 %v58
    %79 = vmatprep.subr.mxu0 0.0
    %80 = vmatpush1.msra.mxu0 %v59
    %81 = vmatprep.subr.mxu0 0.0
    %82 = vmatpush1.msra.mxu0 %v60
    %83 = vmatprep.subr.mxu0 0.0
    %84 = vmatpush1.msra.mxu0 %v61
    %85 = vmatprep.subr.mxu0 0.0
    %86 = vmatpush1.msra.mxu0 %v62
    %87 = vmatprep.subr.mxu0 0.0
    %88 = vmatpush1.msra.mxu0 %v63
    %89 = vmatprep.subr.mxu0 0.0
    %90 = vmatpush1.msra.mxu0 %v64
    %91 = vmatprep.subr.mxu0 0.0
    %92 = vmatpush1.msra.mxu0 %v65
    %93 = vmatprep.subr.mxu0 0.0
    %94 = vmatpush1.msra.mxu0 %v66
    %95 = vmatprep.subr.mxu0 0.0
    %96 = vmatpush1.msra.mxu0 %v67
    %97 = vmatprep.subr.mxu0 0.0
    %98 = vmatpush1.msra.mxu0 %v68
    %99 = vmatprep.subr.mxu0 0.0
    %100 = vmatpush1.msra.mxu0 %v69
    %101 = vmatprep.subr.mxu0 0.0
    %102 = vmatpush1.msra.mxu0 %v70
    %103 = vmatprep.subr.mxu0 0.0
    %104 = vmatpush1.msra.mxu0 0.0
    %105 = vmatprep.subr.mxu0 0.0
    %106 = vmatpush1.msra.mxu0 0.0
    %107 = vmatprep.subr.mxu0 0.0
    %108 = vmatpush1.msra.mxu0 0.0
    %109 = vmatprep.subr.mxu0 0.0
    %110 = vmatpush1.msra.mxu0 0.0
    %111 = vmatprep.subr.mxu0 0.0
    %112 = vmatpush1.msra.mxu0 0.0
    %113 = vmatprep.subr.mxu0 0.0
    %114 = vmatpush1.msra.mxu0 0.0
    %115 = vmatprep.subr.mxu0 0.0
    %116 = vmatpush1.msra.mxu0 0.0
    %117 = vmatprep.subr.mxu0 0.0
    %118 = vmatpush1.msra.mxu0 0.0
    %119 = vmatprep.subr.mxu0 0.0
    %120 = vmatpush1.msra.mxu0 0.0
    %121 = vmatprep.subr.mxu0 0.0
    %122 = vmatpush1.msra.mxu0 0.0
    %123 = vmatprep.subr.mxu0 0.0
    %124 = vmatpush1.msra.mxu0 0.0
    %125 = vmatprep.subr.mxu0 0.0
    %126 = vmatpush1.msra.mxu0 0.0
    %127 = vmatprep.subr.mxu0 0.0
    %128 = vmatpush1.msra.mxu0 0.0
    %129 = vmatprep.subr.mxu0 0.0
    %130 = vmatpush1.msra.mxu0 0.0
    %131 = vmatprep.subr.mxu0 0.0
    %132 = vmatpush1.msra.mxu0 0.0
    %133 = vmatprep.subr.mxu0 0.0
    %134 = vmatpush1.msra.mxu0 0.0
    %135 = vmatprep.mubr.f32.mxu0 0.0
    %136 = vmatmul.mubr.f32.gmra.mrb[0].mxu0 %v54
    %v137 = vpop.f32.mrb[0].mxu0
    %v138 = vadd.f32 0.0, %v137
    %v139 = vpop.f32.mrb[0].mxu0
    %140 = vdwg.mxu0
    %v141 = vadd.f32 %v53, %v138
    %142 = vst [vmem:[#allocation7] sm:$0xff] %v141
    // Predicated region
    $region26: #{tpu_custom_call.1} parent=1 // pred_check
      _
    $region27: #{tpu_custom_call.1} parent=1 // pred_check_branch
      %144 = sbr.rel (0) target = $region29
    $region28: #{tpu_custom_call.1} parent=1 // pred_region
      %s146 = ssub.s32 128, 128
      %147 = vsyncadd [#allocation4], %s146
      %s149 = sshll.u32 [#allocation7], 4
      %s150 = int_to_ptr.vmem [resolvable:$true] %s149
      %152 = dma.vmem_to_hbm [thread:$0]  %s150, 128, %s3, [#allocation4]
    $region29: #{tpu_custom_call.1} parent=1 // pred_fallthru
      _
    // Predicated region
    $region30: #{tpu_custom_call.1} parent=1 // pred_check
      _
    $region31: #{tpu_custom_call.1} parent=1 // pred_check_branch
      %154 = sbr.rel (0) target = $region33
    $region32: #{tpu_custom_call.1} parent=1 // pred_region
      %155 = dma.done [#allocation4], 128
    $region33: #{tpu_custom_call.1} parent=1 // pred_fallthru
      _
    %156 = vsyncpa [#allocation3], 1
    %157 = vsyncpa [#allocation6], 1
    %158 = vsyncpa [#allocation4], 1

</llo_original>
